<compile_context>
chip_gen: v7x
topology: tpu7x:2x2x1
jax: 0.10.0
libtpu: 0.0.40
codegen_flags: <defaults>
</compile_context>

<pallas_src>
import functools

import jax
import jax.numpy as jnp
import numpy as np
from jax.experimental import pallas as pl
from jax.experimental.pallas import tpu as pltpu


def _round_up(x, m):
    return ((x + m - 1) // m) * m


def _pick_tile(n_pad, target):
    """Largest multiple of 128 that divides n_pad and is <= target."""
    target = max(128, min(int(target), n_pad))
    best = 128
    t = 128
    while t <= target:
        if n_pad % t == 0:
            best = t
        t += 128
    return best


def _vmem_capacity_bytes():
    default = 64 * 1024 * 1024          # conservative (v7x per-TC VMEM)
    try:
        info = pltpu.get_tpu_info()
        cap = int(getattr(info, "vmem_capacity_bytes", 0) or 0)
        return cap if cap > 0 else default
    except Exception:
        return default


# ---------------------------------------------------------------------------
# Kernel 1: neighbor pre-projection (+ degree lane), bf16 output
# ---------------------------------------------------------------------------
def neigh_project_kernel(feat_ref, w_neigh_ref, h_aug_ref):
    # [feat | 1] @ [W_neigh_pad | one-hot degree row] -> bf16 (TM, DP)
    h_aug_ref[...] = jnp.dot(
        feat_ref[...], w_neigh_ref[...],
        preferred_element_type=jnp.float32).astype(h_aug_ref.dtype)


# ---------------------------------------------------------------------------
# Kernel 2: tiled adjacency aggregation + fused fc_self finalize
# ---------------------------------------------------------------------------
def aggregate_kernel(adj_ref, h_aug_ref, feat_ref, w_self_ref, b_ref,
                     out_ref, acc_ref, *, deg_lane, tk, h_resident):
    k = pl.program_id(1)

    @pl.when(k == 0)
    def _():
        acc_ref[...] = jnp.zeros_like(acc_ref)

    if h_resident:
        # Whole h_aug lives in VMEM; slice the current src chunk.
        start = pl.multiple_of(k * tk, 128)
        h_tile = h_aug_ref[pl.ds(start, tk), :]
    else:
        h_tile = h_aug_ref[...]

    # bf16 x bf16 -> f32 accumulate on the MXU.
    acc_ref[...] += jnp.dot(adj_ref[...], h_tile,
                            preferred_element_type=jnp.float32)

    @pl.when(k == pl.num_programs(1) - 1)
    def _():
        acc = acc_ref[...]                               # (TM, DP) f32
        deg = acc[:, deg_lane:deg_lane + 1]              # (TM, 1) in-degree
        inv = pl.reciprocal(jnp.maximum(deg, 1.0), approx=False)
        # fc_self fused here: tiny D_in-wide matmul per dst tile, hidden
        # under the adj DMA.
        self_proj = jnp.dot(feat_ref[...], w_self_ref[...],
                            preferred_element_type=jnp.float32)
        out_ref[...] = self_proj + b_ref[...] + acc * inv


# ---------------------------------------------------------------------------
# Wrapper
# ---------------------------------------------------------------------------
def sage_conv_mean(feat, adj, w_self, b_self, w_neigh, b_neigh, *,
                   tile_dst=None, tile_src=None, force_stream_h=False):
    """SAGEConv 'mean' forward.

    feat: (N, D_in) node features.
    adj:  (N, N) dense adjacency, adj[i, j] = 1 iff edge j -> i (pass bf16 to
          skip the host-side pad+cast pass).
    w_*:  (D_in, D_out) (pre-transposed for x @ W), b_*: (1, D_out).
    """
    N, D_in = feat.shape
    D_out = w_self.shape[1]
    D_in1 = D_in + 1                                   # +1 constant-1 column
    DP = _round_up(D_out + 1, 128)                     # lane-dense + deg lane
    deg_lane = D_out

    N_pad = _round_up(N, 128)                          # pad only to 128

    # Per-generation VMEM budget (64 MiB/TC on v7x, 128 MiB on v5e/v6e).
    vmem_cap = _vmem_capacity_bytes()
    vmem_limit = int(vmem_cap * 0.7)
    budget = vmem_limit - (2 << 20)

    # --- dst (parallel) tile: big, but keep >=2 tiles so the grid shards
    # across both v7x TensorCores.
    if tile_dst is not None:
        tm = _pick_tile(N_pad, tile_dst)
    else:
        tm = _pick_tile(N_pad, 512)
        if N_pad >= 256 and N_pad // tm < 2:
            tm = _pick_tile(N_pad, N_pad // 2)

    # --- h_aug residency decision (bf16, conservatively counted x2).
    h_bytes = 2 * N_pad * DP * 2
    h_resident = (not force_stream_h) and (h_bytes <= budget // 4)

    # --- src (contraction) tile: as long as VMEM allows (amortizes grid-step
    # overhead, fewer acc init/finalize transitions, less h_aug restreaming).
    fixed = (2 * tm * D_in1 * 2          # feat dst tile (bf16, dbl-buf)
             + 2 * D_in1 * DP * 2        # resident W_self (bf16)
             + 2 * 1 * DP * 4            # resident bias (f32)
             + 2 * tm * DP * 4           # output tile (f32, dbl-buf)
             + tm * DP * 4)              # acc scratch (f32)
    if h_resident:
        fixed += h_bytes
    per_tk = 2 * tm * 2 + (0 if h_resident else 2 * DP * 2)
    tk_cap = max(128, (budget - fixed) // per_tk)
    tk_target = tile_src if tile_src is not None else 8192
    tk = _pick_tile(N_pad, min(tk_target, tk_cap))

    n_dst = N_pad // tm
    n_src = N_pad // tk

    # --- host-side operand prep (feat/weights are small; adj taken as-is
    # when already bf16 and 128-aligned).
    feat_p = jnp.zeros((N_pad, D_in1), jnp.bfloat16)
    feat_p = feat_p.at[:N, :D_in].set(feat.astype(jnp.bfloat16))
    feat_p = feat_p.at[:, D_in].set(1.0)               # constant-1 column

    if adj.dtype == jnp.bfloat16 and adj.shape == (N_pad, N_pad):
        adj_p = adj                                    # no quadratic pad+cast
    else:
        adj_p = jnp.zeros((N_pad, N_pad), jnp.bfloat16).at[:N, :N].set(
            adj.astype(jnp.bfloat16))
    # TODO(synk): on v7x, store adj in fp8 (0/1 exact) to halve the dominant
    # HBM stream; kept bf16 here for portability with v5e/v6e MXUs.

    w_neigh_p = jnp.zeros((D_in1, DP), jnp.bfloat16)
    w_neigh_p = w_neigh_p.at[:D_in, :D_out].set(w_neigh.astype(jnp.bfloat16))
    w_neigh_p = w_neigh_p.at[D_in, deg_lane].set(1.0)  # degree-lane one-hot

    w_self_p = jnp.zeros((D_in1, DP), jnp.bfloat16)
    w_self_p = w_self_p.at[:D_in, :D_out].set(w_self.astype(jnp.bfloat16))

    b_p = jnp.zeros((1, DP), jnp.float32).at[:, :D_out].set(
        (b_self + b_neigh).astype(jnp.float32))

    # --- Kernel 1: neighbor pre-projection, bf16 output (no f32 self_out).
    h_aug = pl.pallas_call(
        neigh_project_kernel,
        out_shape=jax.ShapeDtypeStruct((N_pad, DP), jnp.bfloat16),
        grid=(n_dst,),
        in_specs=[
            pl.BlockSpec((tm, D_in1), lambda i: (i, 0)),
            pl.BlockSpec((D_in1, DP), lambda i: (0, 0)),
        ],
        out_specs=pl.BlockSpec((tm, DP), lambda i: (i, 0)),
        compiler_params=pltpu.CompilerParams(
            dimension_semantics=("parallel",),
            vmem_limit_bytes=vmem_limit),
    )(feat_p, w_neigh_p)

    # --- Kernel 2: out[i] = feat[i] @ W_self + b + (sum_k adj[i,k] h_aug[k]) / deg[i]
    if h_resident:
        h_spec = pl.BlockSpec((N_pad, DP), lambda i, k: (0, 0))   # resident
    else:
        h_spec = pl.BlockSpec((tk, DP), lambda i, k: (k, 0))      # streamed

    out = pl.pallas_call(
        functools.partial(aggregate_kernel, deg_lane=deg_lane, tk=tk,
                          h_resident=h_resident),
        out_shape=jax.ShapeDtypeStruct((N_pad, DP), jnp.float32),
        grid=(n_dst, n_src),                           # reduction axis last
        in_specs=[
            pl.BlockSpec((tm, tk), lambda i, k: (i, k)),      # adj tile
            h_spec,                                           # h_aug
            pl.BlockSpec((tm, D_in1), lambda i, k: (i, 0)),   # feat dst tile
            pl.BlockSpec((D_in1, DP), lambda i, k: (0, 0)),   # W_self resident
            pl.BlockSpec((1, DP), lambda i, k: (0, 0)),       # bias resident
        ],
        out_specs=pl.BlockSpec((tm, DP), lambda i, k: (i, 0)),
        scratch_shapes=[pltpu.VMEM((tm, DP), jnp.float32)],
        compiler_params=pltpu.CompilerParams(
            dimension_semantics=("parallel", "arbitrary"),
            vmem_limit_bytes=vmem_limit),
    )(adj_p, h_aug, feat_p, w_self_p, b_p)

    return out[:N, :D_out].astype(feat.dtype)


# ---------------------------------------------------------------------------
# Host-side init + reference
# ---------------------------------------------------------------------------
def xavier_uniform(key, shape, gain):
    # shape = (fan_out, fan_in) like torch Linear.weight; returned transposed
    # as (D_in, D_out) for x @ W.
    fan_out, fan_in = shape
    limit = gain * np.sqrt(6.0 / (fan_in + fan_out))
    w = jax.random.uniform(key, shape, jnp.float32, -limit, limit)
    return w.T


def reference(feat, adj, w_self, b_self, w_neigh, b_neigh):
    feat = feat.astype(jnp.float32)
    adj = adj.astype(jnp.float32)
    deg = jnp.sum(adj, axis=-1, keepdims=True)
    h_neigh = (adj @ feat) / jnp.maximum(deg, 1.0)
    return feat @ w_self + b_self + h_neigh @ w_neigh + b_neigh


if __name__ == "__main__":
    N, D_in, D_out = 256, 32, 32
    key = jax.random.PRNGKey(0)
    k_feat, k_adj, k_ws, k_wn, k_bs, k_bn = jax.random.split(key, 6)

    feat = jax.random.normal(k_feat, (N, D_in), jnp.float32)
    # Random directed graph adjacency; adj[i, j] = 1 iff edge j -> i.
    adj = (jax.random.uniform(k_adj, (N, N)) < 0.3).astype(jnp.float32)
    adj = adj * (1.0 - jnp.eye(N, dtype=jnp.float32))        # no self-loops
    adj_bf16 = adj.astype(jnp.bfloat16)   # 0/1 exact; skips in-wrapper pad+cast

    gain = float(np.sqrt(2.0))  # calculate_gain('relu')
    w_self = xavier_uniform(k_ws, (D_out, D_in), gain)       # (D_in, D_out)
    w_neigh = xavier_uniform(k_wn, (D_out, D_in), gain)      # (D_in, D_out)
    b_lim = 1.0 / np.sqrt(D_in)
    b_self = jax.random.uniform(k_bs, (1, D_out), jnp.float32, -b_lim, b_lim)
    b_neigh = jax.random.uniform(k_bn, (1, D_out), jnp.float32, -b_lim, b_lim)

    # Reference from the same bf16-rounded operands the kernel sees.
    ref = np.asarray(reference(
        feat.astype(jnp.bfloat16).astype(jnp.float32), adj,
        w_self.astype(jnp.bfloat16).astype(jnp.float32), b_self,
        w_neigh.astype(jnp.bfloat16).astype(jnp.float32), b_neigh))

    # Run 1: forced small tiles so the (dst, src) grid is (2, 2) and the
    # accumulator init/finalize + resident-h_aug dynamic-slice paths run.
    out = sage_conv_mean(feat, adj_bf16, w_self, b_self, w_neigh, b_neigh,
                         tile_dst=128, tile_src=128)
    out = jax.block_until_ready(out)
    np.testing.assert_allclose(np.asarray(out), ref, rtol=2e-2, atol=2e-2)

    # Run 2: default (auto) tiling, streamed-h_aug path.
    out2 = sage_conv_mean(feat, adj_bf16, w_self, b_self, w_neigh, b_neigh,
                          force_stream_h=True)
    out2 = jax.block_until_ready(out2)
    np.testing.assert_allclose(np.asarray(out2), ref, rtol=2e-2, atol=2e-2)

    print("KERNEL_OK")
</pallas_src>

<mosaic_0001>
module attributes {stable_mosaic.version = 11 : i64} {
  func.func @neigh_project_kernel(%arg0: i32, %arg1: memref<128x33xbf16, #tpu.memory_space<vmem>>, %arg2: memref<33x128xbf16, #tpu.memory_space<vmem>>, %arg3: memref<128x128xbf16, #tpu.memory_space<vmem>>) attributes {dimension_semantics = [#tpu.dimension_semantics<parallel>], iteration_bounds = array<i64: 2>, scalar_prefetch = 0 : i64, scratch_operands = 0 : i64, tpu.core_type = #tpu.core_type<tc>, window_params = [{transform_indices = @transform_0, window_bounds = array<i64: 128, 33>}, {pipeline_mode = #tpu.pipeline_mode<synchronous>, transform_indices = @transform_1, window_bounds = array<i64: 33, 128>}, {transform_indices = @transform_2, window_bounds = array<i64: 128, 128>}]} {
    %c0 = arith.constant 0 : index
    %c0_0 = arith.constant 0 : index
    %0 = vector.load %arg1[%c0, %c0_0] : memref<128x33xbf16, #tpu.memory_space<vmem>>, vector<128x33xbf16>
    %c0_1 = arith.constant 0 : index
    %c0_2 = arith.constant 0 : index
    %1 = vector.load %arg2[%c0_1, %c0_2] : memref<33x128xbf16, #tpu.memory_space<vmem>>, vector<33x128xbf16>
    %cst = arith.constant dense<0.000000e+00> : vector<128x128xf32>
    %2 = tpu.matmul %0, %1, %cst {dimension_numbers = #tpu.dot_dimension_numbers<[1], [0], [0], [1], [0, 0, 1, 1], [], []>} : vector<128x33xbf16>, vector<33x128xbf16>, vector<128x128xf32> -> vector<128x128xf32>
    %3 = arith.truncf %2 : vector<128x128xf32> to vector<128x128xbf16>
    %c0_3 = arith.constant 0 : index
    %c0_4 = arith.constant 0 : index
    %4 = vector.load %arg3[%c0_3, %c0_4] : memref<128x128xbf16, #tpu.memory_space<vmem>>, vector<128x128xbf16>
    tpu.vector_store %arg3[%c0_3, %c0_4], %3 {strides = array<i32>} : memref<128x128xbf16, #tpu.memory_space<vmem>>, vector<128x128xbf16>,
    return
  }
  func.func @transform_0(%arg0: i32) -> (i32, i32) {
    %c0_i32 = arith.constant 0 : i32
    %c0_i32_0 = arith.constant 0 : i32
    return %arg0, %c0_i32 : i32, i32
  }
  func.func @transform_1(%arg0: i32) -> (i32, i32) {
    %c0_i32 = arith.constant 0 : i32
    %c0_i32_0 = arith.constant 0 : i32
    %c0_i32_1 = arith.constant 0 : i32
    return %c0_i32, %c0_i32_0 : i32, i32
  }
  func.func @transform_2(%arg0: i32) -> (i32, i32) {
    %c0_i32 = arith.constant 0 : i32
    %c0_i32_0 = arith.constant 0 : i32
    return %arg0, %c0_i32 : i32, i32
  }
}

</mosaic_0001>

<llo_original>
// kernel: tpu_custom_call.1
$region0: #{tpu_custom_call.1}
  #allocation0 [shape = 'u32[]', space=smem, size = 0x4, offset = 0x4, fixed_abs, tag = 'smem constant byte address 0x4 - core index']
  #allocation1 [shape = 'u32[144,128]{1,0:T(1,128)}', space=vmem, size = 0x12000, scoped, tag = 'internal scratch']
  %s0 = inlined_call_operand.vmem [shape: bf16[256,33], index: 0, kind: input, shape index: {}]
  %s1 = inlined_call_operand.vmem [shape: bf16[33,128], index: 1, kind: input, shape index: {}]
  %s2 = inlined_call_operand.hbm [shape: bf16[256,128], index: 2, kind: output, shape index: {}]
  %s3 = sld [smem:[#allocation0]]
  $region41: #{tpu_custom_call.1} parent=0
    _
  %s5 = ssub.s32 1, %s3
  %s6 = scalar_select 0, %s5, %s3
  $region1: #{tpu_custom_call.1} parent=0
    #allocation2 [shape = 'u8[65536]{0}', space=vmem, size = 0x10000, scoped, tag = 'output window, operand 0']
    #allocation3 [shape = 's32[2]{0}', space=sflag, size = 0x8, scoped, tag = 'scoped memory for tpu_custom_call.1']
    %7 = vsyncpa [#allocation3], 0
    %s8 = scalar_lea.sflag [#allocation3], 1
    %9 = vsyncpa %s8, 0
    loop: start=0, step=1, limit=4
    $region2: #{tpu_custom_call.1} parent=1 // loop_pre_header
      _
    $region3: #{tpu_custom_call.1} parent=1 // loop_header
      %s11 = sphi 0, %s15
      %p12 = scmp.ge.s32.totalorder %s11, 4
      %s21 = sphi 0, %s23
      %s24 = sphi 0, %s21
      %s25 = sphi 0, %s24
      %s41 = sphi 0, %s25
      %s45 = sphi 0, %s45
      %s47 = sphi 0, %s45
      %s48 = sphi 0, %s47
      %s62 = sphi 0, %s48
      %s68 = sphi 0, %s70
      %s71 = sphi 0, %s68
      %s72 = sphi 0, %s71
      %s88 = sphi 0, %s72
    $region4: #{tpu_custom_call.1} parent=1 // loop_header_branch
      %14 = sbr.rel (%p12) target = $region8
    $region5: #{tpu_custom_call.1} parent=1 // loop_body
      %s16 = ssub.s32 %s11, 1
      %s17 = ssub.s32 %s11, 2
      %s18 = sadd.s32 %s11, 1
      %s19 = ssub.s32 %s11, %s18
      %p20 = scmp.eq.s32.totalorder %s19, 0
      %s22 = sadd.s32 %s21, 1
      %s23 = scalar_select %p20, %s21, %s22
      %p26 = pneg %p20
      %p27 = scmp.eq.s32.totalorder %s11, 1
      %p28 = por %p26, %p27
      %p29 = scmp.ne.s32.totalorder %s21, %s24
      %p30 = scmp.eq.s32.totalorder %s11, 0
      %p31 = por %p29, %p30
      %p32 = scmp.ne.s32.totalorder %s21, %s24
      %p33 = scmp.eq.s32.totalorder %s16, 1
      %p34 = por %p32, %p33
      %p35 = scmp.ne.s32.totalorder %s24, %s25
      %p36 = scmp.eq.s32.totalorder %s16, 0
      %p37 = por %p35, %p36
      %p38 = scmp.ne.s32.totalorder %s24, %s25
      %p39 = scmp.eq.s32.totalorder %s17, 1
      %p40 = por %p38, %p39
      %p42 = scmp.ne.s32.totalorder %s25, %s41
      %p43 = scmp.eq.s32.totalorder %s17, 0
      %p44 = por %p42, %p43
      %s46 = sadd.s32 %s45, 1
      %p49 = scmp.eq.s32.totalorder %s11, 1
      %p50 = scmp.ne.s32.totalorder %s45, %s47
      %p51 = scmp.eq.s32.totalorder %s11, 0
      %p52 = por %p50, %p51
      %p53 = scmp.ne.s32.totalorder %s45, %s47
      %p54 = scmp.eq.s32.totalorder %s16, 1
      %p55 = por %p53, %p54
      %p56 = scmp.ne.s32.totalorder %s47, %s48
      %p57 = scmp.eq.s32.totalorder %s16, 0
      %p58 = por %p56, %p57
      %p59 = scmp.ne.s32.totalorder %s47, %s48
      %p60 = scmp.eq.s32.totalorder %s17, 1
      %p61 = por %p59, %p60
      %p63 = scmp.ne.s32.totalorder %s48, %s62
      %p64 = scmp.eq.s32.totalorder %s17, 0
      %p65 = por %p63, %p64
      %s66 = ssub.s32 %s11, %s18
      %p67 = scmp.eq.s32.totalorder %s66, 0
      %s69 = sadd.s32 %s68, 1
      %s70 = scalar_select %p67, %s68, %s69
      %p73 = pneg %p67
      %p74 = scmp.eq.s32.totalorder %s11, 1
      %p75 = por %p73, %p74
      %p76 = scmp.ne.s32.totalorder %s68, %s71
      %p77 = scmp.eq.s32.totalorder %s11, 0
      %p78 = por %p76, %p77
      %p79 = scmp.ne.s32.totalorder %s68, %s71
      %p80 = scmp.eq.s32.totalorder %s16, 1
      %p81 = por %p79, %p80
      %p82 = scmp.ne.s32.totalorder %s71, %s72
      %p83 = scmp.eq.s32.totalorder %s16, 0
      %p84 = por %p82, %p83
      %p85 = scmp.ne.s32.totalorder %s71, %s72
      %p86 = scmp.eq.s32.totalorder %s17, 1
      %p87 = por %p85, %p86
      %p89 = scmp.ne.s32.totalorder %s72, %s88
      %p90 = scmp.eq.s32.totalorder %s17, 0
      %p91 = por %p89, %p90
      %p92 = scmp.le.s32.totalorder 1, %s11
      %p93 = scmp.lt.s32.totalorder %s11, 3
      %p94 = pnand %p92, %p93
      %p95 = pneg %p94
      // Predicated region
      $region9: #{tpu_custom_call.1} parent=5 // pred_check
        _
      $region10: #{tpu_custom_call.1} parent=5 // pred_check_branch
        %97 = sbr.rel (%p94) target = $region12
      $region11: #{tpu_custom_call.1} parent=5 // pred_region
        %s98 = ssub.s32 %s11, 1
        // Predicated region
        $region13: #{tpu_custom_call.1} parent=11 // pred_check
          %p99 = pneg %p58
        $region14: #{tpu_custom_call.1} parent=11 // pred_check_branch
          %101 = sbr.rel (%p99) target = $region16
        $region15: #{tpu_custom_call.1} parent=11 // pred_region
          _
        $region16: #{tpu_custom_call.1} parent=11 // pred_fallthru
          _
      $region12: #{tpu_custom_call.1} parent=5 // pred_fallthru
        _
      %p102 = scmp.lt.s32.totalorder %s11, 2
      // Predicated region
      $region17: #{tpu_custom_call.1} parent=5 // pred_check
        %p103 = pneg %p102
      $region18: #{tpu_custom_call.1} parent=5 // pred_check_branch
        %105 = sbr.rel (%p103) target = $region20
      $region19: #{tpu_custom_call.1} parent=5 // pred_region
        // Predicated region
        $region21: #{tpu_custom_call.1} parent=19 // pred_check
          %p106 = pneg %p31
        $region22: #{tpu_custom_call.1} parent=19 // pred_check_branch
          %108 = sbr.rel (%p106) target = $region24
        $region23: #{tpu_custom_call.1} parent=19 // pred_region
          %s109 = smul.u32 16, %s11
          %p110 = scmp.lt.s32.totalorder %s109, 31
          %s111 = scalar_select %p110, %s109, 31
          %s112 = smul.addr %s111, 4
          %s113 = scalar_lea.vmem %s0, %s112
          %s114 = smul.u32 16, %s11
        $region24: #{tpu_custom_call.1} parent=19 // pred_fallthru
          _
      $region20: #{tpu_custom_call.1} parent=5 // pred_fallthru
        _
      %p115 = scmp.le.s32.totalorder 1, %s11
      %p116 = scmp.lt.s32.totalorder %s11, 3
      %p117 = pnand %p115, %p116
      %p118 = pneg %p117
      // Predicated region
      $region25: #{tpu_custom_call.1} parent=5 // pred_check
        _
      $region26: #{tpu_custom_call.1} parent=5 // pred_check_branch
        %120 = sbr.rel (%p117) target = $region28
      $region27: #{tpu_custom_call.1} parent=5 // pred_region
        %s121 = ssub.s32 %s11, 1
        %s122 = smul.u32 16, %s16
        %p123 = scmp.lt.s32.totalorder %s122, 31
        %s124 = scalar_select %p123, %s122, 31
        %s125 = smul.addr %s124, 4
        %s126 = scalar_lea.vmem %s0, %s125
        %p127 = pneg %p37
        %p128 = pneg %p34
        %p129 = pneg %p58
        %p130 = pneg %p55
        %p131 = pneg %p84
        %p132 = pneg %p81
        %s133 = sand.u32 %s71, 1
        %s134 = scalar_lea.sflag [#allocation3], %s133
        %s135 = sand.u32 %s71, 1
        %s136 = smul.addr %s135, 64
        %s137 = scalar_lea.vmem [#allocation2], %s136
        %s138 = smul.u32 16, %s16
        %p139 = scmp.lt.s32.totalorder %s138, 31
        %s140 = scalar_select %p139, %s138, 31
        %s141 = smul.addr %s140, 4
        %s142 = scalar_lea.vmem %s0, %s141
        %s143 = smul.u32 16, %s16
        %s144 = smul.u32 16, %s16
        %v146 = vld [vmem:[%s142] sm:$0xf]
        %v147 = vld [vmem:[%s142 + $0x4] sm:$0xf]
        %v148 = vld [vmem:[%s142 + $0x8] sm:$0xf]
        %v149 = vld [vmem:[%s142 + $0xc] sm:$0xf]
        %v150 = vld [vmem:[%s142 + $0x10] sm:$0xf]
        %v151 = vld [vmem:[%s142 + $0x14] sm:$0xf]
        %v152 = vld [vmem:[%s142 + $0x18] sm:$0xf]
        %v153 = vld [vmem:[%s142 + $0x1c] sm:$0xf]
        %v154 = vld [vmem:[%s142 + $0x20] sm:$0xf]
        %v155 = vld [vmem:[%s142 + $0x24] sm:$0xf]
        %v156 = vld [vmem:[%s142 + $0x28] sm:$0xf]
        %v157 = vld [vmem:[%s142 + $0x2c] sm:$0xf]
        %v158 = vld [vmem:[%s142 + $0x30] sm:$0xf]
        %v159 = vld [vmem:[%s142 + $0x34] sm:$0xf]
        %v160 = vld [vmem:[%s142 + $0x38] sm:$0xf]
        %v161 = vld [vmem:[%s142 + $0x3c] sm:$0xf]
        %v162 = vld [vmem:[%s1] sm:$0xf]
        %v163 = vld [vmem:[%s1 + $0x4] sm:$0xf]
        %v164 = vld [vmem:[%s1 + $0x8] sm:$0xf]
        %v165 = vld [vmem:[%s1 + $0xc] sm:$0xf]
        %v166 = vld [vmem:[%s1 + $0x10] sm:$0x1]
        %v183 = vunpack.c.l.b16 %v146
        %v184 = vunpack.c.l.b16 %v147
        %v185 = vunpack.c.l.b16 %v148
        %v186 = vunpack.c.l.b16 %v149
        %v187 = vunpack.c.l.b16 %v150
        %v188 = vunpack.c.l.b16 %v151
        %v189 = vunpack.c.l.b16 %v152
        %v190 = vunpack.c.l.b16 %v153
        %v191 = vunpack.c.l.b16 %v154
        %v192 = vunpack.c.l.b16 %v155
        %v193 = vunpack.c.l.b16 %v156
        %v194 = vunpack.c.l.b16 %v157
        %v195 = vunpack.c.l.b16 %v158
        %v196 = vunpack.c.l.b16 %v159
        %v197 = vunpack.c.l.b16 %v160
        %v198 = vunpack.c.l.b16 %v161
        %v199 = vpack.c.b16 %v184, %v183
        %v200 = vpack.c.b16 %v186, %v185
        %v201 = vpack.c.b16 %v188, %v187
        %v202 = vpack.c.b16 %v190, %v189
        %v203 = vpack.c.b16 %v192, %v191
        %v204 = vpack.c.b16 %v194, %v193
        %v205 = vpack.c.b16 %v196, %v195
        %v206 = vpack.c.b16 %v198, %v197
        %v212 = vunpack.c.l.b16 %v162
        %v213 = vunpack.c.l.b16 %v163
        %v214 = vunpack.c.l.b16 %v164
        %v215 = vunpack.c.l.b16 %v165
        %v216 = vunpack.c.l.b16 %v166
        %v217 = vpack.c.b16 %v213, %v212
        %v218 = vpack.c.b16 %v215, %v214
        %v219 = vpack.c.b16 %v216, %v216
        %vm222 = vcmask 269312
        %v224 = vsel %vm222, %v199, 0
        %v227 = vsel %vm222, %v200, 0
        %v230 = vsel %vm222, %v201, 0
        %v233 = vsel %vm222, %v202, 0
        %v236 = vsel %vm222, %v203, 0
        %v239 = vsel %vm222, %v204, 0
        %v242 = vsel %vm222, %v205, 0
        %v245 = vsel %vm222, %v206, 0
        %vm247 = vcmask 1040384
        %v248 = vsel 0, 4294967295, 65535
        %v249 = vsel %vm247, %v248, 0
        %v251 = vand.u32 %v219, %v249
        %253 = vmatprep.subr.bf16.mxu0 0
        %254 = vmatpush1.bf16.msra.mxu0 %v217
        %255 = vmatprep.subr.bf16.mxu0 0
        %256 = vmatpush1.bf16.msra.mxu0 %v218
        %257 = vmatprep.subr.bf16.mxu0 0
        %258 = vmatpush1.bf16.msra.mxu0 %v251
        %259 = vmatprep.subr.bf16.mxu0 0
        %260 = vmatpush1.bf16.msra.mxu0 0
        %261 = vmatprep.subr.bf16.mxu0 0
        %262 = vmatpush1.bf16.msra.mxu0 0
        %263 = vmatprep.subr.bf16.mxu0 0
        %264 = vmatpush1.bf16.msra.mxu0 0
        %265 = vmatprep.subr.bf16.mxu0 0
        %266 = vmatpush1.bf16.msra.mxu0 0
        %267 = vmatprep.subr.bf16.mxu0 0
        %268 = vmatpush1.bf16.msra.mxu0 0
        %269 = vmatprep.subr.bf16.mxu0 0
        %270 = vmatpush1.bf16.msra.mxu0 0
        %271 = vmatprep.subr.bf16.mxu0 0
        %272 = vmatpush1.bf16.msra.mxu0 0
        %273 = vmatprep.subr.bf16.mxu0 0
        %274 = vmatpush1.bf16.msra.mxu0 0
        %275 = vmatprep.subr.bf16.mxu0 0
        %276 = vmatpush1.bf16.msra.mxu0 0
        %277 = vmatprep.subr.bf16.mxu0 0
        %278 = vmatpush1.bf16.msra.mxu0 0
        %279 = vmatprep.subr.bf16.mxu0 0
        %280 = vmatpush1.bf16.msra.mxu0 0
        %281 = vmatprep.subr.bf16.mxu0 0
        %282 = vmatpush1.bf16.msra.mxu0 0
        %283 = vmatprep.subr.bf16.mxu0 0
        %284 = vmatpush1.bf16.msra.mxu0 0
        %285 = vmatprep.mubr.bf16.mxu0 0
        %286 = vmatmul.mubr.bf16.gmra.mrb[0].mxu0 %v224
        %v287 = vpop.f32.mrb[0].mxu0
        %v288 = vadd.f32 0.0, %v287
        %v289 = vpop.f32.mrb[0].mxu0
        %v290 = vpop.f32.mrb[0].mxu0
        %v291 = vadd.f32 0.0, %v290
        %v292 = vpop.f32.mrb[0].mxu0
        %293 = vmatprep.mubr.bf16.mxu0 0
        %294 = vmatmul.mubr.bf16.gmra.mrb[0].mxu0 %v227
        %v295 = vpop.f32.mrb[0].mxu0
        %v296 = vadd.f32 0.0, %v295
        %v297 = vpop.f32.mrb[0].mxu0
        %v298 = vpop.f32.mrb[0].mxu0
        %v299 = vadd.f32 0.0, %v298
        %v300 = vpop.f32.mrb[0].mxu0
        %301 = vmatprep.mubr.bf16.mxu0 0
        %302 = vmatmul.mubr.bf16.gmra.mrb[0].mxu0 %v230
        %v303 = vpop.f32.mrb[0].mxu0
        %v304 = vadd.f32 0.0, %v303
        %v305 = vpop.f32.mrb[0].mxu0
        %v306 = vpop.f32.mrb[0].mxu0
        %v307 = vadd.f32 0.0, %v306
        %v308 = vpop.f32.mrb[0].mxu0
        %309 = vmatprep.mubr.bf16.mxu0 0
        %310 = vmatmul.mubr.bf16.gmra.mrb[0].mxu0 %v233
        %v311 = vpop.f32.mrb[0].mxu0
        %v312 = vadd.f32 0.0, %v311
        %v313 = vpop.f32.mrb[0].mxu0
        %v314 = vpop.f32.mrb[0].mxu0
        %v315 = vadd.f32 0.0, %v314
        %v316 = vpop.f32.mrb[0].mxu0
        %317 = vmatprep.mubr.bf16.mxu0 0
        %318 = vmatmul.mubr.bf16.gmra.mrb[0].mxu0 %v236
        %v319 = vpop.f32.mrb[0].mxu0
        %v320 = vadd.f32 0.0, %v319
        %v321 = vpop.f32.mrb[0].mxu0
        %v322 = vpop.f32.mrb[0].mxu0
        %v323 = vadd.f32 0.0, %v322
        %v324 = vpop.f32.mrb[0].mxu0
        %325 = vmatprep.mubr.bf16.mxu0 0
        %326 = vmatmul.mubr.bf16.gmra.mrb[0].mxu0 %v239
        %v327 = vpop.f32.mrb[0].mxu0
        %v328 = vadd.f32 0.0, %v327
        %v329 = vpop.f32.mrb[0].mxu0
        %v330 = vpop.f32.mrb[0].mxu0
        %v331 = vadd.f32 0.0, %v330
        %v332 = vpop.f32.mrb[0].mxu0
        %333 = vmatprep.mubr.bf16.mxu0 0
        %334 = vmatmul.mubr.bf16.gmra.mrb[0].mxu0 %v242
        %v335 = vpop.f32.mrb[0].mxu0
        %v336 = vadd.f32 0.0, %v335
        %v337 = vpop.f32.mrb[0].mxu0
        %v338 = vpop.f32.mrb[0].mxu0
        %v339 = vadd.f32 0.0, %v338
        %v340 = vpop.f32.mrb[0].mxu0
        %341 = vmatprep.mubr.bf16.mxu0 0
        %342 = vmatmul.mubr.bf16.gmra.mrb[0].mxu0 %v245
        %v343 = vpop.f32.mrb[0].mxu0
        %v344 = vadd.f32 0.0, %v343
        %v345 = vpop.f32.mrb[0].mxu0
        %v346 = vpop.f32.mrb[0].mxu0
        %v347 = vadd.f32 0.0, %v346
        %v348 = vpop.f32.mrb[0].mxu0
        %349 = vdwg.mxu0
        %v350 = vpack.c.bf16 %v291, %v288
        %v351 = vpack.c.bf16 %v299, %v296
        %v352 = vpack.c.bf16 %v307, %v304
        %v353 = vpack.c.bf16 %v315, %v312
        %v354 = vpack.c.bf16 %v323, %v320
        %v355 = vpack.c.bf16 %v331, %v328
        %v356 = vpack.c.bf16 %v339, %v336
        %v357 = vpack.c.bf16 %v347, %v344
        %v366 = vunpack.c.l.b16 %v350
        %v367 = vunpack.c.h.b16 %v350
        %v368 = vunpack.c.l.b16 %v351
        %v369 = vunpack.c.h.b16 %v351
        %v370 = vunpack.c.l.b16 %v352
        %v371 = vunpack.c.h.b16 %v352
        %v372 = vunpack.c.l.b16 %v353
        %v373 = vunpack.c.h.b16 %v353
        %v374 = vunpack.c.l.b16 %v354
        %v375 = vunpack.c.h.b16 %v354
        %v376 = vunpack.c.l.b16 %v355
        %v377 = vunpack.c.h.b16 %v355
        %v378 = vunpack.c.l.b16 %v356
        %v379 = vunpack.c.h.b16 %v356
        %v380 = vunpack.c.l.b16 %v357
        %v381 = vunpack.c.h.b16 %v357
        %v382 = vpack.c.b16 %v366, %v366
        %v383 = vpack.c.b16 %v367, %v367
        %v384 = vpack.c.b16 %v368, %v368
        %v385 = vpack.c.b16 %v369, %v369
        %v386 = vpack.c.b16 %v370, %v370
        %v387 = vpack.c.b16 %v371, %v371
        %v388 = vpack.c.b16 %v372, %v372
        %v389 = vpack.c.b16 %v373, %v373
        %v390 = vpack.c.b16 %v374, %v374
        %v391 = vpack.c.b16 %v375, %v375
        %v392 = vpack.c.b16 %v376, %v376
        %v393 = vpack.c.b16 %v377, %v377
        %v394 = vpack.c.b16 %v378, %v378
        %v395 = vpack.c.b16 %v379, %v379
        %v396 = vpack.c.b16 %v380, %v380
        %v397 = vpack.c.b16 %v381, %v381
        %414 = vst [vmem:[%s137] sm:$0xf] %v382
        %415 = vst [vmem:[%s137 + $0x4] sm:$0xf] %v383
        %416 = vst [vmem:[%s137 + $0x8] sm:$0xf] %v384
        %417 = vst [vmem:[%s137 + $0xc] sm:$0xf] %v385
        %418 = vst [vmem:[%s137 + $0x10] sm:$0xf] %v386
        %419 = vst [vmem:[%s137 + $0x14] sm:$0xf] %v387
        %420 = vst [vmem:[%s137 + $0x18] sm:$0xf] %v388
        %421 = vst [vmem:[%s137 + $0x1c] sm:$0xf] %v389
        %422 = vst [vmem:[%s137 + $0x20] sm:$0xf] %v390
        %423 = vst [vmem:[%s137 + $0x24] sm:$0xf] %v391
        %424 = vst [vmem:[%s137 + $0x28] sm:$0xf] %v392
        %425 = vst [vmem:[%s137 + $0x2c] sm:$0xf] %v393
        %426 = vst [vmem:[%s137 + $0x30] sm:$0xf] %v394
        %427 = vst [vmem:[%s137 + $0x34] sm:$0xf] %v395
        %428 = vst [vmem:[%s137 + $0x38] sm:$0xf] %v396
        %429 = vst [vmem:[%s137 + $0x3c] sm:$0xf] %v397
        %s430 = sand.u32 %s71, 1
        %s431 = scalar_lea.sflag [#allocation3], %s430
        %s432 = sand.u32 %s71, 1
        %s433 = smul.addr %s432, 64
        %s434 = scalar_lea.vmem [#allocation2], %s433
        // Predicated region
        $region29: #{tpu_custom_call.1} parent=27 // pred_check
          %p435 = pneg %p81
        $region30: #{tpu_custom_call.1} parent=27 // pred_check_branch
          %437 = sbr.rel (%p435) target = $region32
        $region31: #{tpu_custom_call.1} parent=27 // pred_region
          %s438 = smul.u32 16, %s16
          %s440 = ssub.s32 1024, 1024
          %441 = vsyncadd %s431, %s440
          %s442 = smul.addr %s438, 64
          %s443 = scalar_lea.hbm %s2, %s442
          %s444 = sshll.u32 %s434, 4
          %s445 = int_to_ptr.vmem [resolvable:$true] %s444
          %450 = dma.vmem_to_hbm [thread:$0]  %s445, 1024, %s443, %s431, 64, 64, 4
        $region32: #{tpu_custom_call.1} parent=27 // pred_fallthru
          _
      $region28: #{tpu_custom_call.1} parent=5 // pred_fallthru
        _
      %p451 = scmp.le.s32.totalorder 2, %s11
      // Predicated region
      $region33: #{tpu_custom_call.1} parent=5 // pred_check
        %p452 = pneg %p451
      $region34: #{tpu_custom_call.1} parent=5 // pred_check_branch
        %454 = sbr.rel (%p452) target = $region36
      $region35: #{tpu_custom_call.1} parent=5 // pred_region
        %s455 = ssub.s32 %s11, 2
        // Predicated region
        $region37: #{tpu_custom_call.1} parent=35 // pred_check
          %p456 = pneg %p87
        $region38: #{tpu_custom_call.1} parent=35 // pred_check_branch
          %458 = sbr.rel (%p456) target = $region40
        $region39: #{tpu_custom_call.1} parent=35 // pred_region
          %s459 = sand.u32 %s72, 1
          %s460 = scalar_lea.sflag [#allocation3], %s459
          %s461 = sand.u32 %s72, 1
          %s462 = smul.addr %s461, 64
          %s463 = scalar_lea.vmem [#allocation2], %s462
          %464 = dma.done %s460, 1024
        $region40: #{tpu_custom_call.1} parent=35 // pred_fallthru
          _
      $region36: #{tpu_custom_call.1} parent=5 // pred_fallthru
        _
    $region6: #{tpu_custom_call.1} parent=1 // loop_footer
      %s15 = sadd.s32 1, %s11
    $region7: #{tpu_custom_call.1} parent=1 // loop_footer_branch
      %10 = sbr.rel target = $region3
    $region8: #{tpu_custom_call.1} parent=1 // loop_exit
      _
    %465 = vsyncpa [#allocation3], 1
    %s466 = scalar_lea.sflag [#allocation3], 1
    %467 = vsyncpa %s466, 1

</llo_original>
